<compile_context>
chip_gen: v5e
topology: v5e:2x2
jax: 0.10.0
libtpu: 0.0.40
codegen_flags: <defaults>
</compile_context>

<pallas_src>
import math

import jax
import jax.numpy as jnp
from jax.experimental import pallas as pl
from jax.experimental.pallas import tpu as pltpu

_LANE = 128
_MAX_LANES = 2048                       # lanes per tile (lane-dense stores)
_TILE_BUDGET_BYTES = 2 * 1024 * 1024    # per-buffer tile; x4 double-buffered = 8 MiB
_MIN_TILE_BYTES = 1 * 1024 * 1024       # never shrink tiles below this for step count
_VMEM_LIMIT_BYTES = 32 * 1024 * 1024    # safe on v5e/v6e/v7x


def _copy_kernel(x_ref, o_ref):
    # Entire hot path of Flatten: one HBM->VMEM->HBM pass over the data.
    o_ref[...] = x_ref[...]


def _grid_semantics():
    """Shard the single grid axis across both TensorCores on v7x."""
    try:
        kind = jax.devices()[0].device_kind.lower()
    except Exception:  # pragma: no cover - defensive
        kind = ""
    if "v7" in kind:
        return (getattr(pltpu, "CORE_PARALLEL", "parallel"),)
    return ("parallel",)


def _largest_divisor_multiple_of(n, multiple, cap):
    """Largest d with d % multiple == 0, n % d == 0, d <= cap; else None."""
    cap = min(cap, n)
    d = (cap // multiple) * multiple
    while d >= multiple:
        if n % d == 0:
            return d
        d -= multiple
    return None


def _pallas_copy_2d(x2d: jax.Array, block_rows: int) -> jax.Array:
    """Streaming identity copy of a 2-D buffer, tiled (block_rows, cols).

    block_rows need not divide rows: the ragged last block is masked by
    Pallas (writes are masked, padded reads are never written back).
    """
    rows, cols = x2d.shape
    nbytes = int(x2d.size) * jnp.dtype(x2d.dtype).itemsize
    return pl.pallas_call(
        _copy_kernel,
        out_shape=jax.ShapeDtypeStruct((rows, cols), x2d.dtype),
        grid_spec=pltpu.PrefetchScalarGridSpec(
            num_scalar_prefetch=0,
            grid=(pl.cdiv(rows, block_rows),),
            in_specs=[pl.BlockSpec((block_rows, cols), lambda i: (i, 0))],
            out_specs=pl.BlockSpec((block_rows, cols), lambda i: (i, 0)),
        ),
        compiler_params=pltpu.CompilerParams(
            dimension_semantics=_grid_semantics(),
            vmem_limit_bytes=_VMEM_LIMIT_BYTES,
        ),
        cost_estimate=pl.CostEstimate(
            flops=0, transcendentals=0, bytes_accessed=2 * nbytes),
    )(x2d)


def flatten(x: jax.Array) -> jax.Array:
    """Equivalent of PyTorch `x.view(x.size(0), -1)` for a contiguous input."""
    b = x.shape[0]
    feat = int(math.prod(x.shape[1:])) if x.ndim > 1 else 1
    n = b * feat
    itemsize = jnp.dtype(x.dtype).itemsize
    # Sublane packing (second-minor block dim): 8 f32/f64, 16 bf16, 32 int8.
    sub = max(8, 32 // itemsize)

    flat = x.reshape(n)                 # metadata-only reshape (free)

    if n % _LANE == 0:
        # --- Fast path: lane-dense (rows, lanes) view, unmasked stores. ---
        # Widest lane count (<= _MAX_LANES) that divides n while keeping at
        # least one sublane-full block of rows.
        lanes = _LANE
        while (lanes * 2 <= _MAX_LANES and n % (lanes * 2) == 0
               and n // (lanes * 2) >= sub):
            lanes *= 2
        rows = n // lanes

        if rows <= sub:
            # Tiny buffer: single full block (full dims are always legal).
            tb = rows
        else:
            row_bytes = lanes * itemsize
            # Block rows: multiple of `sub`, ~2 MiB per buffer tile.
            cap = max(sub, (_TILE_BUDGET_BYTES // row_bytes) // sub * sub)
            # Aim for >= 8 grid steps on large buffers so the double-buffered
            # DMA pipeline (and v7x's two TCs) overlap -- but never shrink a
            # tile below ~1 MiB, where per-step overhead would dominate.
            min_rows = max(sub, -(-_MIN_TILE_BYTES // row_bytes))  # ceil div
            if rows // 8 >= min_rows:
                cap = min(cap, max(sub, (rows // 8) // sub * sub))
            tb = _largest_divisor_multiple_of(rows, sub, cap)
            if tb is None:
                tb = cap                # non-dividing block; ragged edge masked
        out2d = _pallas_copy_2d(flat.reshape(rows, lanes), tb)
        return out2d.reshape(b, feat)   # metadata-only reshape back

    # --- Fallback: element count not a multiple of 128. ---
    # Tile the batch dim (multiple of `sub` rows; ragged last block masked by
    # Pallas); the feature dim is a full-extent block, always layout-legal.
    x2d = x.reshape(b, feat)
    row_bytes = max(1, feat * itemsize)
    if b <= sub:
        tb = b                          # full second-minor dim: always legal
    else:
        cap = max(sub, (_TILE_BUDGET_BYTES // row_bytes) // sub * sub)
        tb = min(cap, (b // sub) * sub)
    # TODO(synk): when feat % 128 != 0 the stores are lane-masked; a bulk/tail
    # split (or direct HBM->HBM DMA) would keep the bulk of the copy unmasked.
    return _pallas_copy_2d(x2d, tb)


if __name__ == "__main__":
    key = jax.random.PRNGKey(0)
    # Small NCHW input consistent with the module: batch=2, channels=4, 16x16.
    x = jax.random.normal(key, (2, 4, 16, 16), dtype=jnp.float32)

    out = flatten(x)
    out = jax.block_until_ready(out)

    # Reference check against plain reshape (what torch .view(B, -1) does).
    ref = x.reshape(x.shape[0], -1)
    assert out.shape == (2, 4 * 16 * 16), out.shape
    assert out.dtype == x.dtype
    assert bool(jnp.array_equal(out, ref))

    print("KERNEL_OK")
</pallas_src>

<mosaic_0001>
module attributes {stable_mosaic.version = 11 : i64} {
  func.func @_copy_kernel(%arg0: i32, %arg1: memref<8x256xf32, #tpu.memory_space<vmem>>, %arg2: memref<8x256xf32, #tpu.memory_space<vmem>>) attributes {dimension_semantics = [#tpu.dimension_semantics<parallel>], iteration_bounds = array<i64: 1>, scalar_prefetch = 0 : i64, scratch_operands = 0 : i64, tpu.core_type = #tpu.core_type<tc>, window_params = [{transform_indices = @transform_0, window_bounds = array<i64: 8, 256>}, {transform_indices = @transform_1, window_bounds = array<i64: 8, 256>}]} {
    %c0 = arith.constant 0 : index
    %c0_0 = arith.constant 0 : index
    %0 = vector.load %arg1[%c0, %c0_0] : memref<8x256xf32, #tpu.memory_space<vmem>>, vector<8x256xf32>
    %c0_1 = arith.constant 0 : index
    %c0_2 = arith.constant 0 : index
    %1 = vector.load %arg2[%c0_1, %c0_2] : memref<8x256xf32, #tpu.memory_space<vmem>>, vector<8x256xf32>
    tpu.vector_store %arg2[%c0_1, %c0_2], %0 {strides = array<i32>} : memref<8x256xf32, #tpu.memory_space<vmem>>, vector<8x256xf32>,
    return
  }
  func.func @transform_0(%arg0: i32) -> (i32, i32) {
    %c0_i32 = arith.constant 0 : i32
    %c0_i32_0 = arith.constant 0 : i32
    return %arg0, %c0_i32 : i32, i32
  }
  func.func @transform_1(%arg0: i32) -> (i32, i32) {
    %c0_i32 = arith.constant 0 : i32
    %c0_i32_0 = arith.constant 0 : i32
    return %arg0, %c0_i32 : i32, i32
  }
}

</mosaic_0001>

<llo_original>
// kernel: tpu_custom_call.1
$region0: #{tpu_custom_call.1}
  #allocation0 [shape = 'u32[]', space=smem, size = 0x4, offset = 0x4, fixed_abs, tag = 'smem constant byte address 0x4 - core index']
  #allocation1 [shape = 'u32[72,128]{1,0:T(1,128)}', space=vmem, size = 0x9000, scoped, tag = 'internal scratch']
  %s0 = inlined_call_operand.hbm [shape: f32[8,256], index: 0, kind: input, shape index: {}]
  %s1 = inlined_call_operand.hbm [shape: f32[8,256], index: 1, kind: output, shape index: {}]
  %s2 = sld [smem:[#allocation0]]
  $region18: #{tpu_custom_call.1} parent=0
    _
  %s4 = ssub.s32 1, %s2
  %s5 = scalar_select 0, %s4, %s2
  $region1: #{tpu_custom_call.1} parent=0
    #allocation2 [shape = 'u8[8192]{0}', space=vmem, size = 0x2000, scoped, tag = 'input window, operand 0, single buffered']
    #allocation3 [shape = 's32[1]{0}', space=sflag, size = 0x4, scoped, tag = 'scoped memory for tpu_custom_call.1']
    #allocation4 [shape = 's32[1]{0}', space=sflag, size = 0x4, scoped, tag = 'scoped memory for tpu_custom_call.1']
    #allocation5 [shape = 'u8[8192]{0}', space=vmem, size = 0x2000, scoped, tag = 'output window, operand 0, single buffered']
    %6 = vsyncpa [#allocation3], 0
    %7 = vsyncpa [#allocation4], 0
    // Predicated region
    $region2: #{tpu_custom_call.1} parent=1 // pred_check
      _
    $region3: #{tpu_custom_call.1} parent=1 // pred_check_branch
      %9 = sbr.rel (0) target = $region5
    $region4: #{tpu_custom_call.1} parent=1 // pred_region
      %11 = vsyncadd [#allocation3], 0
      %s13 = sshll.u32 %s0, 4
      %s14 = int_to_ptr.hbm [resolvable:$true] %s13
      %s15 = sshll.u32 [#allocation2], 4
      %s16 = int_to_ptr.vmem [resolvable:$true] %s15
      %18 = dma.hbm_to_vmem [thread:$0]  %s14, 256, %s16, [#allocation3]
    $region5: #{tpu_custom_call.1} parent=1 // pred_fallthru
      _
    // Predicated region
    $region6: #{tpu_custom_call.1} parent=1 // pred_check
      _
    $region7: #{tpu_custom_call.1} parent=1 // pred_check_branch
      %20 = sbr.rel (0) target = $region9
    $region8: #{tpu_custom_call.1} parent=1 // pred_region
      %22 = dma.done [#allocation3], 256
    $region9: #{tpu_custom_call.1} parent=1 // pred_fallthru
      _
    %v23 = vld [vmem:[#allocation2] sm:$0xff]
    %v24 = vld [vmem:[#allocation2 + $0x8] sm:$0xff]
    %25 = vst [vmem:[#allocation5] sm:$0xff] %v23
    %26 = vst [vmem:[#allocation5 + $0x8] sm:$0xff] %v24
    // Predicated region
    $region10: #{tpu_custom_call.1} parent=1 // pred_check
      _
    $region11: #{tpu_custom_call.1} parent=1 // pred_check_branch
      %28 = sbr.rel (0) target = $region13
    $region12: #{tpu_custom_call.1} parent=1 // pred_region
      %30 = vsyncadd [#allocation4], 0
      %s32 = sshll.u32 [#allocation5], 4
      %s33 = int_to_ptr.vmem [resolvable:$true] %s32
      %s34 = sshll.u32 %s1, 4
      %s35 = int_to_ptr.hbm [resolvable:$true] %s34
      %37 = dma.vmem_to_hbm [thread:$0]  %s33, 256, %s35, [#allocation4]
    $region13: #{tpu_custom_call.1} parent=1 // pred_fallthru
      _
    // Predicated region
    $region14: #{tpu_custom_call.1} parent=1 // pred_check
      _
    $region15: #{tpu_custom_call.1} parent=1 // pred_check_branch
      %39 = sbr.rel (0) target = $region17
    $region16: #{tpu_custom_call.1} parent=1 // pred_region
      %41 = dma.done [#allocation4], 256
    $region17: #{tpu_custom_call.1} parent=1 // pred_fallthru
      _
    %42 = vsyncpa [#allocation3], 1
    %43 = vsyncpa [#allocation4], 1

</llo_original>
